<compile_context>
chip_gen: v5e
topology: v5e:2x2
jax: 0.10.0
libtpu: 0.0.40
codegen_flags: <defaults>
</compile_context>

<pallas_src>
import jax
import jax.numpy as jnp
from jax.experimental import pallas as pl
from jax.experimental.pallas import tpu as pltpu

_MiB = 1024 * 1024
COMPUTE_DTYPE = jnp.bfloat16            # MXU fast path; accumulate in f32
_RESIDENT_WEIGHT_BUDGET = 24 * _MiB     # both (H,H) weights, single-buffered


def _mlp_resident_kernel(x_ref, w1_ref, b1_ref, w2_ref, b2_ref, o_ref):
    # y = relu(x @ W1 + b1) @ W2 + b2 with both weights resident in VMEM.
    h = jnp.dot(x_ref[...], w1_ref[...], preferred_element_type=jnp.float32)
    h = jnp.maximum(h + b1_ref[...], 0.0)                    # (tm,H)+(1,H)
    y = jnp.dot(h.astype(w2_ref.dtype), w2_ref[...],
                preferred_element_type=jnp.float32)
    o_ref[...] = (y + b2_ref[...]).astype(o_ref.dtype)


def _mlp_tiled_kernel(x_ref, w1_ref, b1_ref, w2_ref, b2_ref, o_ref, acc_ref):
    # Streams (H,tn) column slices of W1 / (tn,H) row slices of W2 along grid
    # axis 1 and accumulates y in an f32 VMEM scratch.
    j = pl.program_id(1)

    @pl.when(j == 0)
    def _():
        acc_ref[...] = jnp.zeros_like(acc_ref)

    h = jnp.dot(x_ref[...], w1_ref[...], preferred_element_type=jnp.float32)
    h = jnp.maximum(h + b1_ref[...], 0.0)                    # (tm,tn)+(1,tn)
    acc_ref[...] += jnp.dot(h.astype(w2_ref.dtype), w2_ref[...],
                            preferred_element_type=jnp.float32)

    @pl.when(j == pl.num_programs(1) - 1)
    def _():
        o_ref[...] = (acc_ref[...] + b2_ref[...]).astype(o_ref.dtype)


def _round_down_multiple(v, m):
    return max(m, (v // m) * m)


def mlp_forward(x, w1, b1, w2, b2, *, tm=256, tn=512, force_tiled=False,
                compute_dtype=COMPUTE_DTYPE):
    # Accept arbitrary leading dims, like `x @ W` in PyTorch.
    orig_shape = x.shape
    H = orig_shape[-1]
    x2d = x.reshape(-1, H)
    B = x2d.shape[0]
    assert w1.shape == (H, H) and w2.shape == (H, H)
    assert b1.shape == (H,) and b2.shape == (H,)
    out_dtype = x.dtype
    cbytes = jnp.dtype(compute_dtype).itemsize
    obytes = jnp.dtype(out_dtype).itemsize

    # Batch tile: big enough to keep the MXU fed and amortize grid overhead;
    # never larger than the batch (ragged tail rows are masked by Pallas).
    tm = B if tm >= B else _round_down_multiple(min(tm, B), 8)
    grid_m = pl.cdiv(B, tm)

    # bf16 operands for the MXU; biases stay f32 (added onto f32 accumulators).
    x_c = x2d.astype(compute_dtype)
    w1_c = w1.astype(compute_dtype)
    w2_c = w2.astype(compute_dtype)
    b1_2d = b1.reshape(1, H).astype(jnp.float32)
    b2_2d = b2.reshape(1, H).astype(jnp.float32)

    resident_weight_bytes = 2 * H * H * cbytes
    use_resident = (not force_tiled) and (
        resident_weight_bytes <= _RESIDENT_WEIGHT_BUDGET or H % 128 != 0)

    if not use_resident:
        if H % 128 == 0:
            tn = _round_down_multiple(min(tn, H), 128)
            while H % tn != 0:           # need tn | H (no ragged inner tiles)
                tn -= 128
        else:
            tn = H  # TODO(synk): pad H to a multiple of 128 for lane-dense tiles
        grid_n = H // tn

    def _call(single_buffer_residents):
        def resident_spec(shape, index_map):
            if single_buffer_residents:
                # Grid-invariant block: double-buffering it is pure VMEM waste.
                return pl.BlockSpec(shape, index_map,
                                    pipeline_mode=pl.Buffered(1))
            return pl.BlockSpec(shape, index_map)

        if use_resident:
            kernel_fn = _mlp_resident_kernel
            grid = (grid_m,)
            in_specs = [
                pl.BlockSpec((tm, H), lambda i: (i, 0)),       # x tile
                resident_spec((H, H), lambda i: (0, 0)),       # W1 (resident)
                resident_spec((1, H), lambda i: (0, 0)),       # b1
                resident_spec((H, H), lambda i: (0, 0)),       # W2 (resident)
                resident_spec((1, H), lambda i: (0, 0)),       # b2
            ]
            out_specs = pl.BlockSpec((tm, H), lambda i: (i, 0))
            scratch_shapes = []
            dim_sem = ("parallel",)
            vmem_need = (resident_weight_bytes           # W1+W2 single-buffered
                         + 2 * tm * H * cbytes           # x tile (2 buffers)
                         + 2 * tm * H * obytes           # out tile (2 buffers)
                         + tm * H * 4                    # h intermediate (f32)
                         + 8 * H * 4)                    # biases
        else:
            kernel_fn = _mlp_tiled_kernel
            grid = (grid_m, grid_n)
            in_specs = [
                pl.BlockSpec((tm, H), lambda i, j: (i, 0)),    # x tile
                pl.BlockSpec((H, tn), lambda i, j: (0, j)),    # W1 column slice
                pl.BlockSpec((1, tn), lambda i, j: (0, j)),    # b1 slice
                pl.BlockSpec((tn, H), lambda i, j: (j, 0)),    # W2 row slice
                pl.BlockSpec((1, H), lambda i, j: (0, 0)),     # b2
            ]
            out_specs = pl.BlockSpec((tm, H), lambda i, j: (i, 0))
            scratch_shapes = [pltpu.VMEM((tm, H), jnp.float32)]
            dim_sem = ("parallel", "arbitrary")
            vmem_need = (2 * 2 * H * tn * cbytes         # W1/W2 slices, 2 bufs each
                         + 2 * tm * H * cbytes           # x tile
                         + 2 * tm * H * obytes           # out tile
                         + tm * H * 4                    # f32 accumulator
                         + tm * tn * 4                   # h slice (f32)
                         + 8 * H * 4)                    # biases

        # Raise the scoped-VMEM limit above the 16/32 MiB defaults, with
        # headroom, but never beyond v7x's 64 MiB per-TC physical VMEM.
        vmem_limit = int(min(max(int(vmem_need * 1.5) + 8 * _MiB, 32 * _MiB),
                             64 * _MiB))

        out = pl.pallas_call(
            kernel_fn,
            out_shape=jax.ShapeDtypeStruct((B, H), out_dtype),
            grid_spec=pltpu.PrefetchScalarGridSpec(
                num_scalar_prefetch=0,
                grid=grid,
                in_specs=in_specs,
                out_specs=out_specs,
                scratch_shapes=scratch_shapes,
            ),
            compiler_params=pltpu.CompilerParams(
                dimension_semantics=dim_sem,
                vmem_limit_bytes=vmem_limit),
        )(x_c, w1_c, b1_2d, w2_c, b2_2d)
        return out.reshape(orig_shape)

    try:
        return _call(single_buffer_residents=True)
    except Exception:
        # Fallback for jax versions where pipeline_mode=pl.Buffered(1) is not
        # accepted on input BlockSpecs; identical math, default buffering.
        return _call(single_buffer_residents=False)


def init_params(key, hidden_dim):
    # Matches PyTorch init: randn(in, out) * sqrt(2/(in+out)), bias = zeros.
    k1, k2 = jax.random.split(key)
    scale = jnp.sqrt(jnp.asarray(2.0 / (hidden_dim + hidden_dim), jnp.float32))
    w1 = jax.random.normal(k1, (hidden_dim, hidden_dim), jnp.float32) * scale
    b1 = jnp.zeros((hidden_dim,), jnp.float32)
    w2 = jax.random.normal(k2, (hidden_dim, hidden_dim), jnp.float32) * scale
    b2 = jnp.zeros((hidden_dim,), jnp.float32)
    return w1, b1, w2, b2


def mlp_reference(x, w1, b1, w2, b2):
    h = jnp.maximum(x @ w1 + b1, 0.0)
    return h @ w2 + b2


if __name__ == "__main__":
    key = jax.random.PRNGKey(0)
    kx1, kp1, kx2, kp2, kb1, kb2 = jax.random.split(key, 6)

    # Case 1: small module-scale shapes -> resident-weights path.
    batch, hidden = 8, 32
    x = jax.random.normal(kx1, (batch, hidden), jnp.float32)
    w1, b1, w2, b2 = init_params(kp1, hidden)
    out = jax.block_until_ready(mlp_forward(x, w1, b1, w2, b2))
    ref = mlp_reference(x, w1, b1, w2, b2)
    assert out.shape == (batch, hidden) and out.dtype == jnp.float32
    assert jnp.allclose(out, ref, atol=5e-2, rtol=5e-2), \
        float(jnp.max(jnp.abs(out - ref)))

    # Case 2: exercise the hidden-dim-tiled accumulator path (used when the
    # weights no longer fit resident in VMEM, e.g. large H on v7x's 64 MiB),
    # with nonzero biases to check the broadcast adds.
    batch2, hidden2 = 16, 256
    x2 = jax.random.normal(kx2, (batch2, hidden2), jnp.float32)
    w1_2, _, w2_2, _ = init_params(kp2, hidden2)
    b1_2 = 0.1 * jax.random.normal(kb1, (hidden2,), jnp.float32)
    b2_2 = 0.1 * jax.random.normal(kb2, (hidden2,), jnp.float32)
    out2 = jax.block_until_ready(
        mlp_forward(x2, w1_2, b1_2, w2_2, b2_2, tm=8, tn=128, force_tiled=True))
    ref2 = mlp_reference(x2, w1_2, b1_2, w2_2, b2_2)
    assert out2.shape == (batch2, hidden2)
    assert jnp.allclose(out2, ref2, atol=5e-2, rtol=5e-2), \
        float(jnp.max(jnp.abs(out2 - ref2)))

    print("KERNEL_OK")
</pallas_src>

<mosaic_0001>
module attributes {stable_mosaic.version = 11 : i64} {
  func.func @_mlp_resident_kernel(%arg0: i32, %arg1: memref<8x32xbf16, #tpu.memory_space<vmem>>, %arg2: memref<32x32xbf16, #tpu.memory_space<vmem>>, %arg3: memref<1x32xf32, #tpu.memory_space<vmem>>, %arg4: memref<32x32xbf16, #tpu.memory_space<vmem>>, %arg5: memref<1x32xf32, #tpu.memory_space<vmem>>, %arg6: memref<8x32xf32, #tpu.memory_space<vmem>>) attributes {dimension_semantics = [#tpu.dimension_semantics<parallel>], iteration_bounds = array<i64: 1>, scalar_prefetch = 0 : i64, scratch_operands = 0 : i64, tpu.core_type = #tpu.core_type<tc>, window_params = [{transform_indices = @transform_0, window_bounds = array<i64: 8, 32>}, {pipeline_mode = #tpu.pipeline_mode<synchronous>, transform_indices = @transform_1, window_bounds = array<i64: 32, 32>}, {pipeline_mode = #tpu.pipeline_mode<synchronous>, transform_indices = @transform_2, window_bounds = array<i64: 1, 32>}, {pipeline_mode = #tpu.pipeline_mode<synchronous>, transform_indices = @transform_3, window_bounds = array<i64: 32, 32>}, {pipeline_mode = #tpu.pipeline_mode<synchronous>, transform_indices = @transform_4, window_bounds = array<i64: 1, 32>}, {transform_indices = @transform_5, window_bounds = array<i64: 8, 32>}]} {
    %c0 = arith.constant 0 : index
    %c0_0 = arith.constant 0 : index
    %0 = vector.load %arg1[%c0, %c0_0] : memref<8x32xbf16, #tpu.memory_space<vmem>>, vector<8x32xbf16>
    %c0_1 = arith.constant 0 : index
    %c0_2 = arith.constant 0 : index
    %1 = vector.load %arg2[%c0_1, %c0_2] : memref<32x32xbf16, #tpu.memory_space<vmem>>, vector<32x32xbf16>
    %cst = arith.constant dense<0.000000e+00> : vector<8x32xf32>
    %2 = tpu.matmul %0, %1, %cst {dimension_numbers = #tpu.dot_dimension_numbers<[1], [0], [0], [1], [0, 0, 1, 1], [], []>} : vector<8x32xbf16>, vector<32x32xbf16>, vector<8x32xf32> -> vector<8x32xf32>
    %c0_3 = arith.constant 0 : index
    %c0_4 = arith.constant 0 : index
    %3 = vector.load %arg3[%c0_3, %c0_4] : memref<1x32xf32, #tpu.memory_space<vmem>>, vector<1x32xf32>
    %4 = vector.broadcast %3 : vector<1x32xf32> to vector<8x32xf32>
    %5 = arith.addf %2, %4 : vector<8x32xf32>
    %cst_5 = arith.constant 0.000000e+00 : f32
    %6 = vector.broadcast %cst_5 : f32 to vector<8x32xf32>
    %7 = arith.maximumf %5, %6 : vector<8x32xf32>
    %8 = arith.truncf %7 : vector<8x32xf32> to vector<8x32xbf16>
    %c0_6 = arith.constant 0 : index
    %c0_7 = arith.constant 0 : index
    %9 = vector.load %arg4[%c0_6, %c0_7] : memref<32x32xbf16, #tpu.memory_space<vmem>>, vector<32x32xbf16>
    %cst_8 = arith.constant dense<0.000000e+00> : vector<8x32xf32>
    %10 = tpu.matmul %8, %9, %cst_8 {dimension_numbers = #tpu.dot_dimension_numbers<[1], [0], [0], [1], [0, 0, 1, 1], [], []>} : vector<8x32xbf16>, vector<32x32xbf16>, vector<8x32xf32> -> vector<8x32xf32>
    %c0_9 = arith.constant 0 : index
    %c0_10 = arith.constant 0 : index
    %11 = vector.load %arg5[%c0_9, %c0_10] : memref<1x32xf32, #tpu.memory_space<vmem>>, vector<1x32xf32>
    %12 = vector.broadcast %11 : vector<1x32xf32> to vector<8x32xf32>
    %13 = arith.addf %10, %12 : vector<8x32xf32>
    %c0_11 = arith.constant 0 : index
    %c0_12 = arith.constant 0 : index
    %14 = vector.load %arg6[%c0_11, %c0_12] : memref<8x32xf32, #tpu.memory_space<vmem>>, vector<8x32xf32>
    tpu.vector_store %arg6[%c0_11, %c0_12], %13 {strides = array<i32>} : memref<8x32xf32, #tpu.memory_space<vmem>>, vector<8x32xf32>,
    return
  }
  func.func @transform_0(%arg0: i32) -> (i32, i32) {
    %c0_i32 = arith.constant 0 : i32
    %c0_i32_0 = arith.constant 0 : i32
    return %arg0, %c0_i32 : i32, i32
  }
  func.func @transform_1(%arg0: i32) -> (i32, i32) {
    %c0_i32 = arith.constant 0 : i32
    %c0_i32_0 = arith.constant 0 : i32
    %c0_i32_1 = arith.constant 0 : i32
    return %c0_i32, %c0_i32_0 : i32, i32
  }
  func.func @transform_2(%arg0: i32) -> (i32, i32) {
    %c0_i32 = arith.constant 0 : i32
    %c0_i32_0 = arith.constant 0 : i32
    %c0_i32_1 = arith.constant 0 : i32
    return %c0_i32, %c0_i32_0 : i32, i32
  }
  func.func @transform_3(%arg0: i32) -> (i32, i32) {
    %c0_i32 = arith.constant 0 : i32
    %c0_i32_0 = arith.constant 0 : i32
    %c0_i32_1 = arith.constant 0 : i32
    return %c0_i32, %c0_i32_0 : i32, i32
  }
  func.func @transform_4(%arg0: i32) -> (i32, i32) {
    %c0_i32 = arith.constant 0 : i32
    %c0_i32_0 = arith.constant 0 : i32
    %c0_i32_1 = arith.constant 0 : i32
    return %c0_i32, %c0_i32_0 : i32, i32
  }
  func.func @transform_5(%arg0: i32) -> (i32, i32) {
    %c0_i32 = arith.constant 0 : i32
    %c0_i32_0 = arith.constant 0 : i32
    return %arg0, %c0_i32 : i32, i32
  }
}

module attributes {stable_mosaic.version = 11 : i64} {
  func.func @_mlp_resident_kernel(%arg0: i32, %arg1: memref<8x32xbf16, #tpu.memory_space<vmem>>, %arg2: memref<32x32xbf16, #tpu.memory_space<vmem>>, %arg3: memref<1x32xf32, #tpu.memory_space<vmem>>, %arg4: memref<32x32xbf16, #tpu.memory_space<vmem>>, %arg5: memref<1x32xf32, #tpu.memory_space<vmem>>, %arg6: memref<8x32xf32, #tpu.memory_space<vmem>>) attributes {dimension_semantics = [#tpu.dimension_semantics<parallel>], iteration_bounds = array<i64: 1>, scalar_prefetch = 0 : i64, scratch_operands = 0 : i64, tpu.core_type = #tpu.core_type<tc>, window_params = [{transform_indices = @transform_0, window_bounds = array<i64: 8, 32>}, {pipeline_mode = #tpu.pipeline_mode<synchronous>, transform_indices = @transform_1, window_bounds = array<i64: 32, 32>}, {pipeline_mode = #tpu.pipeline_mode<synchronous>, transform_indices = @transform_2, window_bounds = array<i64: 1, 32>}, {pipeline_mode = #tpu.pipeline_mode<synchronous>, transform_indices = @transform_3, window_bounds = array<i64: 32, 32>}, {pipeline_mode = #tpu.pipeline_mode<synchronous>, transform_indices = @transform_4, window_bounds = array<i64: 1, 32>}, {transform_indices = @transform_5, window_bounds = array<i64: 8, 32>}]} {
    %c0 = arith.constant 0 : index
    %c0_0 = arith.constant 0 : index
    %0 = vector.load %arg1[%c0, %c0_0] : memref<8x32xbf16, #tpu.memory_space<vmem>>, vector<8x32xbf16>
    %c0_1 = arith.constant 0 : index
    %c0_2 = arith.constant 0 : index
    %1 = vector.load %arg2[%c0_1, %c0_2] : memref<32x32xbf16, #tpu.memory_space<vmem>>, vector<32x32xbf16>
    %cst = arith.constant dense<0.000000e+00> : vector<8x32xf32>
    %2 = tpu.matmul %0, %1, %cst {dimension_numbers = #tpu.dot_dimension_numbers<[1], [0], [0], [1], [0, 0, 1, 1], [], []>} : vector<8x32xbf16>, vector<32x32xbf16>, vector<8x32xf32> -> vector<8x32xf32>
    %c0_3 = arith.constant 0 : index
    %c0_4 = arith.constant 0 : index
    %3 = vector.load %arg3[%c0_3, %c0_4] : memref<1x32xf32, #tpu.memory_space<vmem>>, vector<1x32xf32>
    %4 = vector.broadcast %3 : vector<1x32xf32> to vector<8x32xf32>
    %5 = arith.addf %2, %4 : vector<8x32xf32>
    %cst_5 = arith.constant 0.000000e+00 : f32
    %6 = vector.broadcast %cst_5 : f32 to vector<8x32xf32>
    %7 = arith.maximumf %5, %6 : vector<8x32xf32>
    %8 = arith.truncf %7 : vector<8x32xf32> to vector<8x32xbf16>
    %c0_6 = arith.constant 0 : index
    %c0_7 = arith.constant 0 : index
    %9 = vector.load %arg4[%c0_6, %c0_7] : memref<32x32xbf16, #tpu.memory_space<vmem>>, vector<32x32xbf16>
    %cst_8 = arith.constant dense<0.000000e+00> : vector<8x32xf32>
    %10 = tpu.matmul %8, %9, %cst_8 {dimension_numbers = #tpu.dot_dimension_numbers<[1], [0], [0], [1], [0, 0, 1, 1], [], []>} : vector<8x32xbf16>, vector<32x32xbf16>, vector<8x32xf32> -> vector<8x32xf32>
    %c0_9 = arith.constant 0 : index
    %c0_10 = arith.constant 0 : index
    %11 = vector.load %arg5[%c0_9, %c0_10] : memref<1x32xf32, #tpu.memory_space<vmem>>, vector<1x32xf32>
    %12 = vector.broadcast %11 : vector<1x32xf32> to vector<8x32xf32>
    %13 = arith.addf %10, %12 : vector<8x32xf32>
    %c0_11 = arith.constant 0 : index
    %c0_12 = arith.constant 0 : index
    %14 = vector.load %arg6[%c0_11, %c0_12] : memref<8x32xf32, #tpu.memory_space<vmem>>, vector<8x32xf32>
    tpu.vector_store %arg6[%c0_11, %c0_12], %13 {strides = array<i32>} : memref<8x32xf32, #tpu.memory_space<vmem>>, vector<8x32xf32>,
    return
  }
  func.func @transform_0(%arg0: i32) -> (i32, i32) {
    %c0_i32 = arith.constant 0 : i32
    %c0_i32_0 = arith.constant 0 : i32
    return %arg0, %c0_i32 : i32, i32
  }
  func.func @transform_1(%arg0: i32) -> (i32, i32) {
    %c0_i32 = arith.constant 0 : i32
    %c0_i32_0 = arith.constant 0 : i32
    %c0_i32_1 = arith.constant 0 : i32
    return %c0_i32, %c0_i32_0 : i32, i32
  }
  func.func @transform_2(%arg0: i32) -> (i32, i32) {
    %c0_i32 = arith.constant 0 : i32
    %c0_i32_0 = arith.constant 0 : i32
    %c0_i32_1 = arith.constant 0 : i32
    return %c0_i32, %c0_i32_0 : i32, i32
  }
  func.func @transform_3(%arg0: i32) -> (i32, i32) {
    %c0_i32 = arith.constant 0 : i32
    %c0_i32_0 = arith.constant 0 : i32
    %c0_i32_1 = arith.constant 0 : i32
    return %c0_i32, %c0_i32_0 : i32, i32
  }
  func.func @transform_4(%arg0: i32) -> (i32, i32) {
    %c0_i32 = arith.constant 0 : i32
    %c0_i32_0 = arith.constant 0 : i32
    %c0_i32_1 = arith.constant 0 : i32
    return %c0_i32, %c0_i32_0 : i32, i32
  }
  func.func @transform_5(%arg0: i32) -> (i32, i32) {
    %c0_i32 = arith.constant 0 : i32
    %c0_i32_0 = arith.constant 0 : i32
    return %arg0, %c0_i32 : i32, i32
  }
}

</mosaic_0001>

<llo_original>
// kernel: tpu_custom_call.1
$region0: #{tpu_custom_call.1}
  #allocation0 [shape = 'u32[]', space=smem, size = 0x4, offset = 0x4, fixed_abs, tag = 'smem constant byte address 0x4 - core index']
  #allocation1 [shape = 'u32[72,128]{1,0:T(1,128)}', space=vmem, size = 0x9000, scoped, tag = 'internal scratch']
  %s0 = inlined_call_operand.hbm [shape: bf16[8,32], index: 0, kind: input, shape index: {}]
  %s1 = inlined_call_operand.hbm [shape: bf16[32,32], index: 1, kind: input, shape index: {}]
  %s2 = inlined_call_operand.vmem [shape: f32[1,32], index: 2, kind: input, shape index: {}]
  %s3 = inlined_call_operand.hbm [shape: bf16[32,32], index: 3, kind: input, shape index: {}]
  %s4 = inlined_call_operand.vmem [shape: f32[1,32], index: 4, kind: input, shape index: {}]
  %s5 = inlined_call_operand.hbm [shape: f32[8,32], index: 5, kind: output, shape index: {}]
  %s6 = sld [smem:[#allocation0]]
  $region42: #{tpu_custom_call.1} parent=0
    _
  %s8 = ssub.s32 1, %s6
  %s9 = scalar_select 0, %s8, %s6
  $region1: #{tpu_custom_call.1} parent=0
    #allocation2 [shape = 'u8[2048]{0}', space=vmem, size = 0x800, scoped, tag = 'input window, operand 0, single buffered']
    #allocation3 [shape = 's32[1]{0}', space=sflag, size = 0x4, scoped, tag = 'scoped memory for tpu_custom_call.1']
    #allocation4 [shape = 's32[1]{0}', space=sflag, size = 0x4, scoped, tag = 'scoped memory for tpu_custom_call.1']
    #allocation5 [shape = 'u8[8192]{0}', space=vmem, size = 0x2000, scoped, tag = 'input window, operand 1, single buffered']
    #allocation6 [shape = 's32[1]{0}', space=sflag, size = 0x4, scoped, tag = 'scoped memory for tpu_custom_call.1']
    #allocation7 [shape = 'u8[8192]{0}', space=vmem, size = 0x2000, scoped, tag = 'input window, operand 3, single buffered']
    #allocation8 [shape = 'u8[4096]{0}', space=vmem, size = 0x1000, scoped, tag = 'output window, operand 0, single buffered']
    %10 = vsyncpa [#allocation3], 0
    %11 = vsyncpa [#allocation6], 0
    %12 = vsyncpa [#allocation4], 0
    // Predicated region
    $region2: #{tpu_custom_call.1} parent=1 // pred_check
      _
    $region3: #{tpu_custom_call.1} parent=1 // pred_check_branch
      %14 = sbr.rel (0) target = $region5
    $region4: #{tpu_custom_call.1} parent=1 // pred_region
      %16 = vsyncadd [#allocation3], 0
      %s18 = sshll.u32 %s0, 4
      %s19 = int_to_ptr.hbm [resolvable:$true] %s18
      %s20 = sshll.u32 [#allocation2], 4
      %s21 = int_to_ptr.vmem [resolvable:$true] %s20
      %23 = dma.hbm_to_vmem [thread:$0]  %s19, 64, %s21, [#allocation3]
    $region5: #{tpu_custom_call.1} parent=1 // pred_fallthru
      _
    // Predicated region
    $region6: #{tpu_custom_call.1} parent=1 // pred_check
      _
    $region7: #{tpu_custom_call.1} parent=1 // pred_check_branch
      %25 = sbr.rel (0) target = $region9
    $region8: #{tpu_custom_call.1} parent=1 // pred_region
      %27 = vsyncadd [#allocation6], 0
      %s28 = sshll.u32 %s1, 4
      %s29 = int_to_ptr.hbm [resolvable:$true] %s28
      %s30 = sshll.u32 [#allocation5], 4
      %s31 = int_to_ptr.vmem [resolvable:$true] %s30
      %36 = dma.hbm_to_vmem [thread:$0]  %s29, 256, %s31, [#allocation6], 64, 64, 4
    $region9: #{tpu_custom_call.1} parent=1 // pred_fallthru
      _
    // Predicated region
    $region10: #{tpu_custom_call.1} parent=1 // pred_check
      _
    $region11: #{tpu_custom_call.1} parent=1 // pred_check_branch
      %38 = sbr.rel (0) target = $region13
    $region12: #{tpu_custom_call.1} parent=1 // pred_region
      _
    $region13: #{tpu_custom_call.1} parent=1 // pred_fallthru
      _
    // Predicated region
    $region14: #{tpu_custom_call.1} parent=1 // pred_check
      _
    $region15: #{tpu_custom_call.1} parent=1 // pred_check_branch
      %40 = sbr.rel (0) target = $region17
    $region16: #{tpu_custom_call.1} parent=1 // pred_region
      %42 = vsyncadd [#allocation6], 0
      %s43 = sshll.u32 %s3, 4
      %s44 = int_to_ptr.hbm [resolvable:$true] %s43
      %s45 = sshll.u32 [#allocation7], 4
      %s46 = int_to_ptr.vmem [resolvable:$true] %s45
      %51 = dma.hbm_to_vmem [thread:$0]  %s44, 256, %s46, [#allocation6], 64, 64, 4
    $region17: #{tpu_custom_call.1} parent=1 // pred_fallthru
      _
    // Predicated region
    $region18: #{tpu_custom_call.1} parent=1 // pred_check
      _
    $region19: #{tpu_custom_call.1} parent=1 // pred_check_branch
      %53 = sbr.rel (0) target = $region21
    $region20: #{tpu_custom_call.1} parent=1 // pred_region
      _
    $region21: #{tpu_custom_call.1} parent=1 // pred_fallthru
      _
    // Predicated region
    $region22: #{tpu_custom_call.1} parent=1 // pred_check
      _
    $region23: #{tpu_custom_call.1} parent=1 // pred_check_branch
      %55 = sbr.rel (0) target = $region25
    $region24: #{tpu_custom_call.1} parent=1 // pred_region
      %57 = dma.done [#allocation3], 64
    $region25: #{tpu_custom_call.1} parent=1 // pred_fallthru
      _
    // Predicated region
    $region26: #{tpu_custom_call.1} parent=1 // pred_check
      _
    $region27: #{tpu_custom_call.1} parent=1 // pred_check_branch
      %59 = sbr.rel (0) target = $region29
    $region28: #{tpu_custom_call.1} parent=1 // pred_region
      %61 = dma.done [#allocation6], 256
    $region29: #{tpu_custom_call.1} parent=1 // pred_fallthru
      _
    // Predicated region
    $region30: #{tpu_custom_call.1} parent=1 // pred_check
      _
    $region31: #{tpu_custom_call.1} parent=1 // pred_check_branch
      %63 = sbr.rel (0) target = $region33
    $region32: #{tpu_custom_call.1} parent=1 // pred_region
      %65 = dma.done [#allocation6], 256
    $region33: #{tpu_custom_call.1} parent=1 // pred_fallthru
      _
    %v67 = vld [vmem:[#allocation2] sm:$0xf]
    %v68 = vld [vmem:[#allocation5] sm:$0xf]
    %v69 = vld [vmem:[#allocation5 + $0x4] sm:$0xf]
    %v70 = vld [vmem:[#allocation5 + $0x8] sm:$0xf]
    %v71 = vld [vmem:[#allocation5 + $0xc] sm:$0xf]
    %v72 = vld [vmem:[%s2] sm:$0x1]
    %v74 = vperm.slane %v72, 0
    %v80 = vunpack.c.l.b16 %v68
    %v81 = vunpack.c.l.b16 %v69
    %v82 = vunpack.c.l.b16 %v70
    %v83 = vunpack.c.l.b16 %v71
    %v84 = vpack.c.b16 %v81, %v80
    %v85 = vpack.c.b16 %v83, %v82
    %vm88 = vcmask 261120
    %v90 = vsel %vm88, %v67, 0
    %92 = vmatpush.bf16.msra.mxu0 0
    %93 = vmatpush.bf16.msra.mxu0 0
    %94 = vmatpush.bf16.msra.mxu0 0
    %95 = vmatpush.bf16.msra.mxu0 0
    %96 = vmatpush.bf16.msra.mxu0 0
    %97 = vmatpush.bf16.msra.mxu0 0
    %98 = vmatpush.bf16.msra.mxu0 %v85
    %99 = vmatpush.bf16.msra.mxu0 %v84
    %100 = vmatmul.bf16.gmra.mxu0 %v90
    %v101 = vpop.f32.mrf.mxu0
    %v102 = vadd.f32 %v74, %v101
    %v103 = vpop.f32.mrf.mxu0
    %104 = vdwg.mxu0
    %v105 = vmax.f32 %v102, 0.0
    %v106 = vpack.c.bf16 %v105, %v105
    %v107 = vld [vmem:[#allocation7] sm:$0xf]
    %v108 = vld [vmem:[#allocation7 + $0x4] sm:$0xf]
    %v109 = vld [vmem:[#allocation7 + $0x8] sm:$0xf]
    %v110 = vld [vmem:[#allocation7 + $0xc] sm:$0xf]
    %v111 = vld [vmem:[%s4] sm:$0x1]
    %v113 = vperm.slane %v111, 0
    %v119 = vunpack.c.l.b16 %v107
    %v120 = vunpack.c.l.b16 %v108
    %v121 = vunpack.c.l.b16 %v109
    %v122 = vunpack.c.l.b16 %v110
    %v123 = vpack.c.b16 %v120, %v119
    %v124 = vpack.c.b16 %v122, %v121
    %v128 = vsel %vm88, %v106, 0
    %130 = vmatpush.bf16.msra.mxu0 0
    %131 = vmatpush.bf16.msra.mxu0 0
    %132 = vmatpush.bf16.msra.mxu0 0
    %133 = vmatpush.bf16.msra.mxu0 0
    %134 = vmatpush.bf16.msra.mxu0 0
    %135 = vmatpush.bf16.msra.mxu0 0
    %136 = vmatpush.bf16.msra.mxu0 %v124
    %137 = vmatpush.bf16.msra.mxu0 %v123
    %138 = vmatmul.bf16.gmra.mxu0 %v128
    %v139 = vpop.f32.mrf.mxu0
    %v140 = vadd.f32 %v113, %v139
    %v141 = vpop.f32.mrf.mxu0
    %142 = vdwg.mxu0
    %143 = vst.msk [vmem:[#allocation8] sm:$0xff] %vm88, %v140
    // Predicated region
    $region34: #{tpu_custom_call.1} parent=1 // pred_check
      _
    $region35: #{tpu_custom_call.1} parent=1 // pred_check_branch
      %145 = sbr.rel (0) target = $region37
    $region36: #{tpu_custom_call.1} parent=1 // pred_region
      %147 = vsyncadd [#allocation4], 0
      %s149 = sshll.u32 [#allocation8], 4
      %s150 = int_to_ptr.vmem [resolvable:$true] %s149
      %s151 = sshll.u32 %s5, 4
      %s152 = int_to_ptr.hbm [resolvable:$true] %s151
      %154 = dma.vmem_to_hbm [thread:$0]  %s150, 128, %s152, [#allocation4]
    $region37: #{tpu_custom_call.1} parent=1 // pred_fallthru
      _
    // Predicated region
    $region38: #{tpu_custom_call.1} parent=1 // pred_check
      _
    $region39: #{tpu_custom_call.1} parent=1 // pred_check_branch
      %156 = sbr.rel (0) target = $region41
    $region40: #{tpu_custom_call.1} parent=1 // pred_region
      %158 = dma.done [#allocation4], 128
    $region41: #{tpu_custom_call.1} parent=1 // pred_fallthru
      _
    %159 = vsyncpa [#allocation3], 1
    %160 = vsyncpa [#allocation6], 1
    %161 = vsyncpa [#allocation4], 1

// kernel: tpu_custom_call.1
$region0: #{tpu_custom_call.1}
  #allocation0 [shape = 'u32[]', space=smem, size = 0x4, offset = 0x4, fixed_abs, tag = 'smem constant byte address 0x4 - core index']
  #allocation1 [shape = 'u32[72,128]{1,0:T(1,128)}', space=vmem, size = 0x9000, scoped, tag = 'internal scratch']
  %s0 = inlined_call_operand.hbm [shape: bf16[8,32], index: 0, kind: input, shape index: {}]
  %s1 = inlined_call_operand.hbm [shape: bf16[32,32], index: 1, kind: input, shape index: {}]
  %s2 = inlined_call_operand.vmem [shape: f32[1,32], index: 2, kind: input, shape index: {}]
  %s3 = inlined_call_operand.hbm [shape: bf16[32,32], index: 3, kind: input, shape index: {}]
  %s4 = inlined_call_operand.vmem [shape: f32[1,32], index: 4, kind: input, shape index: {}]
  %s5 = inlined_call_operand.hbm [shape: f32[8,32], index: 5, kind: output, shape index: {}]
  %s6 = sld [smem:[#allocation0]]
  $region42: #{tpu_custom_call.1} parent=0
    _
  %s8 = ssub.s32 1, %s6
  %s9 = scalar_select 0, %s8, %s6
  $region1: #{tpu_custom_call.1} parent=0
    #allocation2 [shape = 'u8[2048]{0}', space=vmem, size = 0x800, scoped, tag = 'input window, operand 0, single buffered']
    #allocation3 [shape = 's32[1]{0}', space=sflag, size = 0x4, scoped, tag = 'scoped memory for tpu_custom_call.1']
    #allocation4 [shape = 's32[1]{0}', space=sflag, size = 0x4, scoped, tag = 'scoped memory for tpu_custom_call.1']
    #allocation5 [shape = 'u8[8192]{0}', space=vmem, size = 0x2000, scoped, tag = 'input window, operand 1, single buffered']
    #allocation6 [shape = 's32[1]{0}', space=sflag, size = 0x4, scoped, tag = 'scoped memory for tpu_custom_call.1']
    #allocation7 [shape = 'u8[8192]{0}', space=vmem, size = 0x2000, scoped, tag = 'input window, operand 3, single buffered']
    #allocation8 [shape = 'u8[4096]{0}', space=vmem, size = 0x1000, scoped, tag = 'output window, operand 0, single buffered']
    %10 = vsyncpa [#allocation3], 0
    %11 = vsyncpa [#allocation6], 0
    %12 = vsyncpa [#allocation4], 0
    // Predicated region
    $region2: #{tpu_custom_call.1} parent=1 // pred_check
      _
    $region3: #{tpu_custom_call.1} parent=1 // pred_check_branch
      %14 = sbr.rel (0) target = $region5
    $region4: #{tpu_custom_call.1} parent=1 // pred_region
      %16 = vsyncadd [#allocation3], 0
      %s18 = sshll.u32 %s0, 4
      %s19 = int_to_ptr.hbm [resolvable:$true] %s18
      %s20 = sshll.u32 [#allocation2], 4
      %s21 = int_to_ptr.vmem [resolvable:$true] %s20
      %23 = dma.hbm_to_vmem [thread:$0]  %s19, 64, %s21, [#allocation3]
    $region5: #{tpu_custom_call.1} parent=1 // pred_fallthru
      _
    // Predicated region
    $region6: #{tpu_custom_call.1} parent=1 // pred_check
      _
    $region7: #{tpu_custom_call.1} parent=1 // pred_check_branch
      %25 = sbr.rel (0) target = $region9
    $region8: #{tpu_custom_call.1} parent=1 // pred_region
      %27 = vsyncadd [#allocation6], 0
      %s28 = sshll.u32 %s1, 4
      %s29 = int_to_ptr.hbm [resolvable:$true] %s28
      %s30 = sshll.u32 [#allocation5], 4
      %s31 = int_to_ptr.vmem [resolvable:$true] %s30
      %36 = dma.hbm_to_vmem [thread:$0]  %s29, 256, %s31, [#allocation6], 64, 64, 4
    $region9: #{tpu_custom_call.1} parent=1 // pred_fallthru
      _
    // Predicated region
    $region10: #{tpu_custom_call.1} parent=1 // pred_check
      _
    $region11: #{tpu_custom_call.1} parent=1 // pred_check_branch
      %38 = sbr.rel (0) target = $region13
    $region12: #{tpu_custom_call.1} parent=1 // pred_region
      _
    $region13: #{tpu_custom_call.1} parent=1 // pred_fallthru
      _
    // Predicated region
    $region14: #{tpu_custom_call.1} parent=1 // pred_check
      _
    $region15: #{tpu_custom_call.1} parent=1 // pred_check_branch
      %40 = sbr.rel (0) target = $region17
    $region16: #{tpu_custom_call.1} parent=1 // pred_region
      %42 = vsyncadd [#allocation6], 0
      %s43 = sshll.u32 %s3, 4
      %s44 = int_to_ptr.hbm [resolvable:$true] %s43
      %s45 = sshll.u32 [#allocation7], 4
      %s46 = int_to_ptr.vmem [resolvable:$true] %s45
      %51 = dma.hbm_to_vmem [thread:$0]  %s44, 256, %s46, [#allocation6], 64, 64, 4
    $region17: #{tpu_custom_call.1} parent=1 // pred_fallthru
      _
    // Predicated region
    $region18: #{tpu_custom_call.1} parent=1 // pred_check
      _
    $region19: #{tpu_custom_call.1} parent=1 // pred_check_branch
      %53 = sbr.rel (0) target = $region21
    $region20: #{tpu_custom_call.1} parent=1 // pred_region
      _
    $region21: #{tpu_custom_call.1} parent=1 // pred_fallthru
      _
    // Predicated region
    $region22: #{tpu_custom_call.1} parent=1 // pred_check
      _
    $region23: #{tpu_custom_call.1} parent=1 // pred_check_branch
      %55 = sbr.rel (0) target = $region25
    $region24: #{tpu_custom_call.1} parent=1 // pred_region
      %57 = dma.done [#allocation3], 64
    $region25: #{tpu_custom_call.1} parent=1 // pred_fallthru
      _
    // Predicated region
    $region26: #{tpu_custom_call.1} parent=1 // pred_check
      _
    $region27: #{tpu_custom_call.1} parent=1 // pred_check_branch
      %59 = sbr.rel (0) target = $region29
    $region28: #{tpu_custom_call.1} parent=1 // pred_region
      %61 = dma.done [#allocation6], 256
    $region29: #{tpu_custom_call.1} parent=1 // pred_fallthru
      _
    // Predicated region
    $region30: #{tpu_custom_call.1} parent=1 // pred_check
      _
    $region31: #{tpu_custom_call.1} parent=1 // pred_check_branch
      %63 = sbr.rel (0) target = $region33
    $region32: #{tpu_custom_call.1} parent=1 // pred_region
      %65 = dma.done [#allocation6], 256
    $region33: #{tpu_custom_call.1} parent=1 // pred_fallthru
      _
    %v67 = vld [vmem:[#allocation2] sm:$0xf]
    %v68 = vld [vmem:[#allocation5] sm:$0xf]
    %v69 = vld [vmem:[#allocation5 + $0x4] sm:$0xf]
    %v70 = vld [vmem:[#allocation5 + $0x8] sm:$0xf]
    %v71 = vld [vmem:[#allocation5 + $0xc] sm:$0xf]
    %v72 = vld [vmem:[%s2] sm:$0x1]
    %v74 = vperm.slane %v72, 0
    %v80 = vunpack.c.l.b16 %v68
    %v81 = vunpack.c.l.b16 %v69
    %v82 = vunpack.c.l.b16 %v70
    %v83 = vunpack.c.l.b16 %v71
    %v84 = vpack.c.b16 %v81, %v80
    %v85 = vpack.c.b16 %v83, %v82
    %vm88 = vcmask 261120
    %v90 = vsel %vm88, %v67, 0
    %92 = vmatpush.bf16.msra.mxu0 0
    %93 = vmatpush.bf16.msra.mxu0 0
    %94 = vmatpush.bf16.msra.mxu0 0
    %95 = vmatpush.bf16.msra.mxu0 0
    %96 = vmatpush.bf16.msra.mxu0 0
    %97 = vmatpush.bf16.msra.mxu0 0
    %98 = vmatpush.bf16.msra.mxu0 %v85
    %99 = vmatpush.bf16.msra.mxu0 %v84
    %100 = vmatmul.bf16.gmra.mxu0 %v90
    %v101 = vpop.f32.mrf.mxu0
    %v102 = vadd.f32 %v74, %v101
    %v103 = vpop.f32.mrf.mxu0
    %104 = vdwg.mxu0
    %v105 = vmax.f32 %v102, 0.0
    %v106 = vpack.c.bf16 %v105, %v105
    %v107 = vld [vmem:[#allocation7] sm:$0xf]
    %v108 = vld [vmem:[#allocation7 + $0x4] sm:$0xf]
    %v109 = vld [vmem:[#allocation7 + $0x8] sm:$0xf]
    %v110 = vld [vmem:[#allocation7 + $0xc] sm:$0xf]
    %v111 = vld [vmem:[%s4] sm:$0x1]
    %v113 = vperm.slane %v111, 0
    %v119 = vunpack.c.l.b16 %v107
    %v120 = vunpack.c.l.b16 %v108
    %v121 = vunpack.c.l.b16 %v109
    %v122 = vunpack.c.l.b16 %v110
    %v123 = vpack.c.b16 %v120, %v119
    %v124 = vpack.c.b16 %v122, %v121
    %v128 = vsel %vm88, %v106, 0
    %130 = vmatpush.bf16.msra.mxu0 0
    %131 = vmatpush.bf16.msra.mxu0 0
    %132 = vmatpush.bf16.msra.mxu0 0
    %133 = vmatpush.bf16.msra.mxu0 0
    %134 = vmatpush.bf16.msra.mxu0 0
    %135 = vmatpush.bf16.msra.mxu0 0
    %136 = vmatpush.bf16.msra.mxu0 %v124
    %137 = vmatpush.bf16.msra.mxu0 %v123
    %138 = vmatmul.bf16.gmra.mxu0 %v128
    %v139 = vpop.f32.mrf.mxu0
    %v140 = vadd.f32 %v113, %v139
    %v141 = vpop.f32.mrf.mxu0
    %142 = vdwg.mxu0
    %143 = vst.msk [vmem:[#allocation8] sm:$0xff] %vm88, %v140
    // Predicated region
    $region34: #{tpu_custom_call.1} parent=1 // pred_check
      _
    $region35: #{tpu_custom_call.1} parent=1 // pred_check_branch
      %145 = sbr.rel (0) target = $region37
    $region36: #{tpu_custom_call.1} parent=1 // pred_region
      %147 = vsyncadd [#allocation4], 0
      %s149 = sshll.u32 [#allocation8], 4
      %s150 = int_to_ptr.vmem [resolvable:$true] %s149
      %s151 = sshll.u32 %s5, 4
      %s152 = int_to_ptr.hbm [resolvable:$true] %s151
      %154 = dma.vmem_to_hbm [thread:$0]  %s150, 128, %s152, [#allocation4]
    $region37: #{tpu_custom_call.1} parent=1 // pred_fallthru
      _
    // Predicated region
    $region38: #{tpu_custom_call.1} parent=1 // pred_check
      _
    $region39: #{tpu_custom_call.1} parent=1 // pred_check_branch
      %156 = sbr.rel (0) target = $region41
    $region40: #{tpu_custom_call.1} parent=1 // pred_region
      %158 = dma.done [#allocation4], 128
    $region41: #{tpu_custom_call.1} parent=1 // pred_fallthru
      _
    %159 = vsyncpa [#allocation3], 1
    %160 = vsyncpa [#allocation6], 1
    %161 = vsyncpa [#allocation4], 1

</llo_original>
